<compile_context>
chip_gen: v7x
topology: tpu7x:2x2x1
jax: 0.10.0
libtpu: 0.0.40
codegen_flags: <defaults>
</compile_context>

<pallas_src>
import jax
import jax.numpy as jnp
from jax.experimental import pallas as pl
from jax.experimental.pallas import tpu as pltpu


def _make_broadcast_kernel(nb_hops: int):
    def _broadcast_kernel(mem_ref, *out_refs):
        # mem_ref:  (H, E) -- full parameter matrix, resident in VMEM
        # out_refs: H refs, each a (TB, E) batch-tile of that hop's output.
        for h in range(nb_hops):
            # Static row slice of the resident parameters, sublane-broadcast
            # across the batch tile (VPU broadcast-store; no MXU work here).
            out_refs[h][...] = jnp.broadcast_to(
                mem_ref[h : h + 1, :], out_refs[h].shape
            )

    return _broadcast_kernel


def static_reformulator_forward(rel: jax.Array, memories: jax.Array):
    """memories: (H, E) stacked parameters; rel: (B, E). Returns list of (B, E)."""
    batch_size = rel.shape[0]
    nb_hops, embedding_size = memories.shape
    dtype = memories.dtype
    itemsize = jnp.dtype(dtype).itemsize

    # Batch tile: at most 512 rows (measured ~85% of HBM roofline at 512-1024
    # row tiles), multiple of 8 sublanes when tiling, full batch otherwise.
    tile_b = min(512, batch_size)
    grid = (pl.cdiv(batch_size, tile_b),)

    out_shape = tuple(
        jax.ShapeDtypeStruct((batch_size, embedding_size), dtype)
        for _ in range(nb_hops)
    )
    out_specs = tuple(
        pl.BlockSpec((tile_b, embedding_size), lambda b: (b, 0))
        for _ in range(nb_hops)
    )

    # Memory-bound op: tell XLA so it can overlap neighbours.
    cost = pl.CostEstimate(
        flops=0,
        transcendentals=0,
        bytes_accessed=(
            nb_hops * batch_size * embedding_size * itemsize  # writes
            + nb_hops * embedding_size * itemsize             # param read
        ),
    )

    outs = pl.pallas_call(
        _make_broadcast_kernel(nb_hops),
        out_shape=out_shape,
        grid=grid,
        in_specs=[
            # Full (H, E) block, constant index -> stays resident in VMEM,
            # no per-step input DMA and no padded (1, E) sublane layout.
            pl.BlockSpec((nb_hops, embedding_size), lambda b: (0, 0)),
        ],
        out_specs=out_specs,
        compiler_params=pltpu.CompilerParams(
            dimension_semantics=("parallel",),
        ),
        cost_estimate=cost,
    )(memories)

    # Same structure as the PyTorch module: a list of H tensors, each (B, E).
    return list(outs)


def static_reformulator_prior(rel: jax.Array):
    # BaseReformulator.prior returns None.
    return None


def init_static_reformulator_params(
    key, nb_hops: int, embedding_size: int,
    init_name: str = "uniform", lower_bound: float = -1.0, upper_bound: float = 1.0,
    std: float = 1.0,
):
    """Deterministic parameter init matching StaticReformulator._param shapes."""
    keys = jax.random.split(key, nb_hops)
    mems = []
    for k in keys:
        if init_name == "uniform":
            w = jax.random.uniform(
                k, (1, embedding_size), dtype=jnp.float32,
                minval=lower_bound, maxval=upper_bound,
            )
        elif init_name == "normal":
            w = std * jax.random.normal(k, (1, embedding_size), dtype=jnp.float32)
        else:
            w = jnp.zeros((1, embedding_size), dtype=jnp.float32)
        mems.append(w)
    # stack (H, 1, E) -> (H, E)
    return jnp.concatenate(mems, axis=0)


if __name__ == "__main__":
    nb_hops = 3
    embedding_size = 32
    batch_size = 8

    key = jax.random.PRNGKey(0)
    k_rel, k_params = jax.random.split(key)

    # rel: relation embeddings, (B, E); only batch size matters for forward.
    rel = jax.random.normal(k_rel, (batch_size, embedding_size), dtype=jnp.float32)
    memories = init_static_reformulator_params(k_params, nb_hops, embedding_size)

    outs = static_reformulator_forward(rel, memories)
    outs = [jax.block_until_ready(o) for o in outs]

    # Reference check (pure JAX): memory.repeat(batch_size, 1)
    refs = [jnp.tile(memories[h : h + 1], (batch_size, 1)) for h in range(nb_hops)]
    assert len(outs) == nb_hops
    for o, r in zip(outs, refs):
        assert o.shape == (batch_size, embedding_size)
        assert o.dtype == jnp.float32
        assert jnp.allclose(o, r), "mismatch vs reference"

    assert static_reformulator_prior(rel) is None

    print("KERNEL_OK")
</pallas_src>

<mosaic_0001>
module attributes {stable_mosaic.version = 11 : i64} {
  func.func @_broadcast_kernel(%arg0: i32, %arg1: memref<3x32xf32, #tpu.memory_space<vmem>>, %arg2: memref<8x32xf32, #tpu.memory_space<vmem>>, %arg3: memref<8x32xf32, #tpu.memory_space<vmem>>, %arg4: memref<8x32xf32, #tpu.memory_space<vmem>>) attributes {dimension_semantics = [#tpu.dimension_semantics<parallel>], iteration_bounds = array<i64: 1>, scalar_prefetch = 0 : i64, scratch_operands = 0 : i64, tpu.core_type = #tpu.core_type<tc>, window_params = [{pipeline_mode = #tpu.pipeline_mode<synchronous>, transform_indices = @transform_0, window_bounds = array<i64: 3, 32>}, {transform_indices = @transform_1, window_bounds = array<i64: 8, 32>}, {transform_indices = @transform_2, window_bounds = array<i64: 8, 32>}, {transform_indices = @transform_3, window_bounds = array<i64: 8, 32>}]} {
    %c0 = arith.constant 0 : index
    %c0_0 = arith.constant 0 : index
    %0 = vector.load %arg1[%c0, %c0_0] : memref<3x32xf32, #tpu.memory_space<vmem>>, vector<1x32xf32>
    %1 = vector.shape_cast %0 : vector<1x32xf32> to vector<1x32xf32>
    %2 = vector.broadcast %1 : vector<1x32xf32> to vector<8x32xf32>
    %c0_1 = arith.constant 0 : index
    %c0_2 = arith.constant 0 : index
    %3 = vector.load %arg2[%c0_1, %c0_2] : memref<8x32xf32, #tpu.memory_space<vmem>>, vector<8x32xf32>
    tpu.vector_store %arg2[%c0_1, %c0_2], %2 {strides = array<i32>} : memref<8x32xf32, #tpu.memory_space<vmem>>, vector<8x32xf32>,
    %c1 = arith.constant 1 : index
    %c0_3 = arith.constant 0 : index
    %4 = vector.load %arg1[%c1, %c0_3] : memref<3x32xf32, #tpu.memory_space<vmem>>, vector<1x32xf32>
    %5 = vector.shape_cast %4 : vector<1x32xf32> to vector<1x32xf32>
    %6 = vector.broadcast %5 : vector<1x32xf32> to vector<8x32xf32>
    %c0_4 = arith.constant 0 : index
    %c0_5 = arith.constant 0 : index
    %7 = vector.load %arg3[%c0_4, %c0_5] : memref<8x32xf32, #tpu.memory_space<vmem>>, vector<8x32xf32>
    tpu.vector_store %arg3[%c0_4, %c0_5], %6 {strides = array<i32>} : memref<8x32xf32, #tpu.memory_space<vmem>>, vector<8x32xf32>,
    %c2 = arith.constant 2 : index
    %c0_6 = arith.constant 0 : index
    %8 = vector.load %arg1[%c2, %c0_6] : memref<3x32xf32, #tpu.memory_space<vmem>>, vector<1x32xf32>
    %9 = vector.shape_cast %8 : vector<1x32xf32> to vector<1x32xf32>
    %10 = vector.broadcast %9 : vector<1x32xf32> to vector<8x32xf32>
    %c0_7 = arith.constant 0 : index
    %c0_8 = arith.constant 0 : index
    %11 = vector.load %arg4[%c0_7, %c0_8] : memref<8x32xf32, #tpu.memory_space<vmem>>, vector<8x32xf32>
    tpu.vector_store %arg4[%c0_7, %c0_8], %10 {strides = array<i32>} : memref<8x32xf32, #tpu.memory_space<vmem>>, vector<8x32xf32>,
    return
  }
  func.func @transform_0(%arg0: i32) -> (i32, i32) {
    %c0_i32 = arith.constant 0 : i32
    %c0_i32_0 = arith.constant 0 : i32
    %c0_i32_1 = arith.constant 0 : i32
    return %c0_i32, %c0_i32_0 : i32, i32
  }
  func.func @transform_1(%arg0: i32) -> (i32, i32) {
    %c0_i32 = arith.constant 0 : i32
    %c0_i32_0 = arith.constant 0 : i32
    return %arg0, %c0_i32 : i32, i32
  }
  func.func @transform_2(%arg0: i32) -> (i32, i32) {
    %c0_i32 = arith.constant 0 : i32
    %c0_i32_0 = arith.constant 0 : i32
    return %arg0, %c0_i32 : i32, i32
  }
  func.func @transform_3(%arg0: i32) -> (i32, i32) {
    %c0_i32 = arith.constant 0 : i32
    %c0_i32_0 = arith.constant 0 : i32
    return %arg0, %c0_i32 : i32, i32
  }
}

</mosaic_0001>

<llo_original>
// kernel: tpu_custom_call.1
$region0: #{tpu_custom_call.1}
  #allocation0 [shape = 'u32[]', space=smem, size = 0x4, offset = 0x4, fixed_abs, tag = 'smem constant byte address 0x4 - core index']
  #allocation1 [shape = 'u32[144,128]{1,0:T(1,128)}', space=vmem, size = 0x12000, scoped, tag = 'internal scratch']
  %s0 = inlined_call_operand.hbm [shape: f32[3,32], index: 0, kind: input, shape index: {}]
  %s1 = inlined_call_operand.hbm [shape: f32[8,32], index: 1, kind: output, shape index: {0}]
  %s2 = inlined_call_operand.hbm [shape: f32[8,32], index: 2, kind: output, shape index: {1}]
  %s3 = inlined_call_operand.hbm [shape: f32[8,32], index: 3, kind: output, shape index: {2}]
  %4 = xla_tuple %s1, %s2, %s3
  %s5 = sld [smem:[#allocation0]]
  $region34: #{tpu_custom_call.1} parent=0
    _
  %s7 = ssub.s32 1, %s5
  %s8 = scalar_select 0, %s7, %s5
  $region1: #{tpu_custom_call.1} parent=0
    #allocation2 [shape = 'u8[2048]{0}', space=vmem, size = 0x800, scoped, tag = 'input window, operand 0, single buffered']
    #allocation3 [shape = 's32[1]{0}', space=sflag, size = 0x4, scoped, tag = 'scoped memory for tpu_custom_call.1']
    #allocation4 [shape = 's32[1]{0}', space=sflag, size = 0x4, scoped, tag = 'scoped memory for tpu_custom_call.1']
    #allocation5 [shape = 'u8[4096]{0}', space=vmem, size = 0x1000, scoped, tag = 'output window, operand 0, single buffered']
    #allocation6 [shape = 'u8[4096]{0}', space=vmem, size = 0x1000, scoped, tag = 'output window, operand 1, single buffered']
    #allocation7 [shape = 's32[1]{0}', space=sflag, size = 0x4, scoped, tag = 'scoped memory for tpu_custom_call.1']
    #allocation8 [shape = 'u8[4096]{0}', space=vmem, size = 0x1000, scoped, tag = 'output window, operand 2, single buffered']
    %9 = vsyncpa [#allocation3], 0
    %10 = vsyncpa [#allocation4], 0
    %11 = vsyncpa [#allocation7], 0
    // Predicated region
    $region2: #{tpu_custom_call.1} parent=1 // pred_check
      _
    $region3: #{tpu_custom_call.1} parent=1 // pred_check_branch
      %13 = sbr.rel (0) target = $region5
    $region4: #{tpu_custom_call.1} parent=1 // pred_region
      %s15 = ssub.s32 64, 64
      %16 = vsyncadd [#allocation3], %s15
      %s18 = sshll.u32 [#allocation2], 4
      %s19 = int_to_ptr.vmem [resolvable:$true] %s18
      %21 = dma.hbm_to_vmem [thread:$0]  %s0, 64, %s19, [#allocation3]
    $region5: #{tpu_custom_call.1} parent=1 // pred_fallthru
      _
    // Predicated region
    $region6: #{tpu_custom_call.1} parent=1 // pred_check
      _
    $region7: #{tpu_custom_call.1} parent=1 // pred_check_branch
      %23 = sbr.rel (0) target = $region9
    $region8: #{tpu_custom_call.1} parent=1 // pred_region
      %24 = dma.done [#allocation3], 64
    $region9: #{tpu_custom_call.1} parent=1 // pred_fallthru
      _
    %v25 = vld [vmem:[#allocation2] sm:$0x1]
    %v26 = vlaneseq
    %v27 = vshrl.u32 %v26, 7
    %v28 = vsub.s32 0, %v27
    %v29 = vrot.slane %v25, %v28
    %vm30 = vcmask 261120
    %31 = vst.msk [vmem:[#allocation5] sm:$0xff] %vm30, %v29
    %v32 = vld [vmem:[#allocation2 + $0x1] sm:$0x1]
    %v33 = vlaneseq
    %v34 = vshrl.u32 %v33, 7
    %v35 = vsub.s32 0, %v34
    %v36 = vrot.slane %v32, %v35
    %37 = vst.msk [vmem:[#allocation6] sm:$0xff] %vm30, %v36
    %v38 = vld [vmem:[#allocation2 + $0x2] sm:$0x1]
    %v39 = vlaneseq
    %v40 = vshrl.u32 %v39, 7
    %v41 = vsub.s32 0, %v40
    %v42 = vrot.slane %v38, %v41
    %43 = vst.msk [vmem:[#allocation8] sm:$0xff] %vm30, %v42
    // Predicated region
    $region10: #{tpu_custom_call.1} parent=1 // pred_check
      _
    $region11: #{tpu_custom_call.1} parent=1 // pred_check_branch
      %45 = sbr.rel (0) target = $region13
    $region12: #{tpu_custom_call.1} parent=1 // pred_region
      %s47 = ssub.s32 128, 128
      %48 = vsyncadd [#allocation4], %s47
      %s50 = sshll.u32 [#allocation5], 4
      %s51 = int_to_ptr.vmem [resolvable:$true] %s50
      %53 = dma.vmem_to_hbm [thread:$0]  %s51, 128, %s1, [#allocation4]
    $region13: #{tpu_custom_call.1} parent=1 // pred_fallthru
      _
    // Predicated region
    $region14: #{tpu_custom_call.1} parent=1 // pred_check
      _
    $region15: #{tpu_custom_call.1} parent=1 // pred_check_branch
      %55 = sbr.rel (0) target = $region17
    $region16: #{tpu_custom_call.1} parent=1 // pred_region
      %s57 = ssub.s32 128, 128
      %58 = vsyncadd [#allocation7], %s57
      %s60 = sshll.u32 [#allocation6], 4
      %s61 = int_to_ptr.vmem [resolvable:$true] %s60
      %63 = dma.vmem_to_hbm [thread:$0]  %s61, 128, %s2, [#allocation7]
    $region17: #{tpu_custom_call.1} parent=1 // pred_fallthru
      _
    // Predicated region
    $region18: #{tpu_custom_call.1} parent=1 // pred_check
      _
    $region19: #{tpu_custom_call.1} parent=1 // pred_check_branch
      %65 = sbr.rel (0) target = $region21
    $region20: #{tpu_custom_call.1} parent=1 // pred_region
      %s67 = ssub.s32 128, 128
      %68 = vsyncadd [#allocation7], %s67
      %s70 = sshll.u32 [#allocation8], 4
      %s71 = int_to_ptr.vmem [resolvable:$true] %s70
      %73 = dma.vmem_to_hbm [thread:$0]  %s71, 128, %s3, [#allocation7]
    $region21: #{tpu_custom_call.1} parent=1 // pred_fallthru
      _
    // Predicated region
    $region22: #{tpu_custom_call.1} parent=1 // pred_check
      _
    $region23: #{tpu_custom_call.1} parent=1 // pred_check_branch
      %75 = sbr.rel (0) target = $region25
    $region24: #{tpu_custom_call.1} parent=1 // pred_region
      %76 = dma.done [#allocation4], 128
    $region25: #{tpu_custom_call.1} parent=1 // pred_fallthru
      _
    // Predicated region
    $region26: #{tpu_custom_call.1} parent=1 // pred_check
      _
    $region27: #{tpu_custom_call.1} parent=1 // pred_check_branch
      %78 = sbr.rel (0) target = $region29
    $region28: #{tpu_custom_call.1} parent=1 // pred_region
      %79 = dma.done [#allocation7], 128
    $region29: #{tpu_custom_call.1} parent=1 // pred_fallthru
      _
    // Predicated region
    $region30: #{tpu_custom_call.1} parent=1 // pred_check
      _
    $region31: #{tpu_custom_call.1} parent=1 // pred_check_branch
      %81 = sbr.rel (0) target = $region33
    $region32: #{tpu_custom_call.1} parent=1 // pred_region
      %82 = dma.done [#allocation7], 128
    $region33: #{tpu_custom_call.1} parent=1 // pred_fallthru
      _
    %83 = vsyncpa [#allocation3], 1
    %84 = vsyncpa [#allocation4], 1
    %85 = vsyncpa [#allocation7], 1

</llo_original>
